<compile_context>
chip_gen: v6e
topology: v6e:2x2x1
jax: 0.10.0
libtpu: 0.0.40
codegen_flags: <defaults>
</compile_context>

<pallas_src>
import functools

import jax
import jax.numpy as jnp
from jax.experimental import pallas as pl
from jax.experimental.pallas import tpu as pltpu

LANE = 128  # TPU lane width; pad lane-mapped dims (D, class width of the output) to this.
TB = 8      # batch tile (f32 sublane count)


# ----------------------------------------------------------------------------
# Fused kernel: encoder -> adapters -> L2 normalize -> scaled logits
# ----------------------------------------------------------------------------
def _custom_clip_kernel(
    x_ref,            # (TB, P)       f32    flattened pixels (cast to bf16 in-kernel)
    enc_w_ref,        # (P, Dp)       bf16   frozen encoder stand-in
    enc_b_ref,        # (1, Dp)       f32
    img_wd_ref,       # (Dp, Dr)      bf16   image adapter down-proj
    img_bd_ref,       # (1, Dr)       f32
    img_wu_ref,       # (Dr, Dp)      bf16   image adapter up-proj
    img_bu_ref,       # (1, Dp)       f32
    txt_feat_ref,     # (C, Dp)       bf16   frozen text features (real class rows only)
    txt_wd_ref,       # (Dp, Dr)      bf16
    txt_bd_ref,       # (1, Dr)       f32
    txt_wu_ref,       # (Dr, Dp)      bf16
    txt_bu_ref,       # (1, Dp)       f32
    scale_ref,        # (1,)          f32    logit_scale (SMEM)
    o_ref,            # (TB, Cp)      f32    lane-dense padded logits
):
    # Frozen "CLIP image encoder" stand-in: bf16 MXU matmul, f32 accumulation.
    # Pixel cast happens here (VPU), hidden under the MXU dot.
    x = x_ref[...].astype(jnp.bfloat16)
    img = (
        jnp.dot(x, enc_w_ref[...], preferred_element_type=jnp.float32)
        + enc_b_ref[...]
    )

    def adapter(v, wd_ref, bd_ref, wu_ref, bu_ref):
        # identity + up_proj(relu(down_proj(v))): bf16 MXU operands, f32 epilogue.
        h = (
            jnp.dot(v.astype(jnp.bfloat16), wd_ref[...],
                    preferred_element_type=jnp.float32)
            + bd_ref[...]
        )
        h = jnp.maximum(h, 0.0)
        up = (
            jnp.dot(h.astype(jnp.bfloat16), wu_ref[...],
                    preferred_element_type=jnp.float32)
            + bu_ref[...]
        )
        return v + up

    proj_image = adapter(img, img_wd_ref, img_bd_ref, img_wu_ref, img_bu_ref)
    # Text branch on the real C (=16) class rows only: no dead pad-row compute.
    proj_text = adapter(txt_feat_ref[...].astype(jnp.float32),
                        txt_wd_ref, txt_bd_ref, txt_wu_ref, txt_bu_ref)

    def l2_normalize(v):
        # F.normalize(p=2, dim=-1): v / max(||v||, 1e-12) == v * rsqrt(max(||v||^2, 1e-24))
        sq = jnp.sum(v * v, axis=-1, keepdims=True)
        return v * jax.lax.rsqrt(jnp.maximum(sq, 1e-24))

    img_n = l2_normalize(proj_image)          # (TB, Dp) f32
    txt_n = l2_normalize(proj_text)           # (C,  Dp) f32

    # Zero-pad the normalized text rows up to the lane-dense class width so the
    # padded logit columns are EXACTLY zero (wrapper slices them off).
    cp = o_ref.shape[-1]
    c, dp = txt_n.shape
    if cp > c:  # static (trace-time) check
        txt_n = jnp.concatenate(
            [txt_n, jnp.zeros((cp - c, dp), jnp.float32)], axis=0)

    # Contract last dims directly (no materialized transpose of the text matrix).
    logits = jax.lax.dot_general(
        img_n, txt_n,
        dimension_numbers=(((1,), (1,)), ((), ())),
        preferred_element_type=jnp.float32,
    )
    o_ref[...] = logits * jnp.exp(scale_ref[0])


# ----------------------------------------------------------------------------
# Wrapper
# ----------------------------------------------------------------------------
@functools.partial(jax.jit, static_argnames=("num_classes",))
def custom_clip_forward(padded_params, pixel_values, *, num_classes):
    p = padded_params
    B = pixel_values.shape[0]
    x = pixel_values.reshape(B, -1)                       # (B, P) f32; bf16 cast is in-kernel
    P = x.shape[1]

    # Pad batch to a full sublane tile so stores are unmasked and MXU rows are filled.
    Bp = ((B + TB - 1) // TB) * TB
    if Bp != B:
        x = jnp.pad(x, ((0, Bp - B), (0, 0)))

    C = p["text_features"].shape[0]
    Cp = ((C + LANE - 1) // LANE) * LANE                  # lane-dense logits width

    def whole(a):  # whole-array VMEM-resident block (grid-invariant)
        return pl.BlockSpec(a.shape, lambda b: (0, 0))

    logits_padded = pl.pallas_call(
        _custom_clip_kernel,
        out_shape=jax.ShapeDtypeStruct((Bp, Cp), jnp.float32),
        grid=(Bp // TB,),
        in_specs=[
            pl.BlockSpec((TB, P), lambda b: (b, 0)),       # x: blocked over batch
            whole(p["enc_w"]), whole(p["enc_b"]),
            whole(p["img_wd"]), whole(p["img_bd"]),
            whole(p["img_wu"]), whole(p["img_bu"]),
            whole(p["text_features"]),
            whole(p["txt_wd"]), whole(p["txt_bd"]),
            whole(p["txt_wu"]), whole(p["txt_bu"]),
            pl.BlockSpec(memory_space=pltpu.MemorySpace.SMEM),  # logit_scale scalar
        ],
        out_specs=pl.BlockSpec((TB, Cp), lambda b: (b, 0)),
        compiler_params=pltpu.CompilerParams(
            dimension_semantics=("parallel",)),            # batch blocks across TCs (v7x)
    )(
        x,
        p["enc_w"], p["enc_b"],
        p["img_wd"], p["img_bd"], p["img_wu"], p["img_bu"],
        p["text_features"],
        p["txt_wd"], p["txt_bd"], p["txt_wu"], p["txt_bu"],
        p["logit_scale"],
    )
    # Drop padded batch rows and (exactly-zero) padded class columns.
    return logits_padded[:B, :num_classes]


# ----------------------------------------------------------------------------
# Parameters (logical shapes) + one-time padding / dtype prep
# ----------------------------------------------------------------------------
def init_params(key, *, in_chans=4, spatial=16, proj_dim=64, reduction=4,
                num_classes=16):
    P = in_chans * spatial * spatial
    Dr = proj_dim // reduction
    ks = jax.random.split(key, 9)

    def kaiming_relu(k, shape):  # fan_in mode, relu gain
        fan_in = shape[0]
        return jax.random.normal(k, shape, jnp.float32) * jnp.sqrt(2.0 / fan_in)

    return {
        # frozen stand-in image encoder
        "enc_w": jax.random.normal(ks[0], (P, proj_dim), jnp.float32) * 0.02,
        "enc_b": jnp.zeros((1, proj_dim), jnp.float32),
        # image adapter   (nn.Linear stores W as (out,in); we store (in,out) = W.T)
        "img_wd": kaiming_relu(ks[1], (proj_dim, Dr)),
        "img_bd": jax.random.normal(ks[2], (1, Dr), jnp.float32),
        "img_wu": jax.random.normal(ks[3], (Dr, proj_dim), jnp.float32),
        "img_bu": jax.random.normal(ks[4], (1, proj_dim), jnp.float32),
        # text adapter
        "txt_wd": kaiming_relu(ks[5], (proj_dim, Dr)),
        "txt_bd": jax.random.normal(ks[6], (1, Dr), jnp.float32),
        "txt_wu": jax.random.normal(ks[7], (Dr, proj_dim), jnp.float32),
        "txt_bu": jax.random.normal(ks[8], (1, proj_dim), jnp.float32),
        # frozen precomputed text features buffer (num_classes, proj_dim)
        "text_features": jax.random.normal(
            jax.random.PRNGKey(1234), (num_classes, proj_dim), jnp.float32
        ),
        # CLIP logit_scale init = ln(1/0.07)
        "logit_scale": jnp.array([jnp.log(1.0 / 0.07)], jnp.float32),
    }


def pad_params(params, *, lane=LANE):
    """One-time prep (outside the hot path):
      * pad the feature dim D up to the lane width (zero padding is exactly neutral:
        padded feature columns stay identically zero through encoder, adapters and
        normalize),
      * do NOT pad the adapter hidden dim Dr or the class row count,
      * cast frozen / stationary MXU operands to bf16 (weights & text features);
        biases stay f32 for the f32 epilogue.
    """
    def rup(n):
        return ((n + lane - 1) // lane) * lane

    D = params["enc_w"].shape[1]
    Dp = rup(D)

    def pad_cols(a):  # pad last dim D -> Dp
        return jnp.pad(a, ((0, 0), (0, Dp - a.shape[1])))

    def pad_rows(a):  # pad first dim D -> Dp
        return jnp.pad(a, ((0, Dp - a.shape[0]), (0, 0)))

    return {
        "enc_w": pad_cols(params["enc_w"]).astype(jnp.bfloat16),        # (P, Dp)
        "enc_b": pad_cols(params["enc_b"]),                             # (1, Dp) f32
        "img_wd": pad_rows(params["img_wd"]).astype(jnp.bfloat16),      # (Dp, Dr)
        "img_bd": params["img_bd"],                                     # (1, Dr) f32
        "img_wu": pad_cols(params["img_wu"]).astype(jnp.bfloat16),      # (Dr, Dp)
        "img_bu": pad_cols(params["img_bu"]),                           # (1, Dp) f32
        "txt_wd": pad_rows(params["txt_wd"]).astype(jnp.bfloat16),
        "txt_bd": params["txt_bd"],
        "txt_wu": pad_cols(params["txt_wu"]).astype(jnp.bfloat16),
        "txt_bu": pad_cols(params["txt_bu"]),
        "text_features": pad_cols(params["text_features"]).astype(jnp.bfloat16),  # (C, Dp)
        "logit_scale": params["logit_scale"],
    }


# ----------------------------------------------------------------------------
# Pure-JAX reference (unpadded, logical shapes) for validation
# ----------------------------------------------------------------------------
def _reference_forward(params, pixel_values):
    # Mirrors the kernel's intentional mixed precision: bf16 MXU operands,
    # f32 accumulation / epilogue.  Not bit-identical to a pure-f32 PyTorch run.
    B = pixel_values.shape[0]
    x = pixel_values.reshape(B, -1)
    with jax.default_matmul_precision("highest"):
        img = (
            jnp.dot(
                x.astype(jnp.bfloat16),
                params["enc_w"].astype(jnp.bfloat16),
                preferred_element_type=jnp.float32,
            )
            + params["enc_b"]
        )

        def adapter(v, wd, bd, wu, bu):
            h = jnp.dot(v.astype(jnp.bfloat16), wd.astype(jnp.bfloat16),
                        preferred_element_type=jnp.float32) + bd
            h = jnp.maximum(h, 0.0)
            up = jnp.dot(h.astype(jnp.bfloat16), wu.astype(jnp.bfloat16),
                         preferred_element_type=jnp.float32) + bu
            return v + up

        pi = adapter(img, params["img_wd"], params["img_bd"],
                     params["img_wu"], params["img_bu"])
        pt_in = params["text_features"].astype(jnp.bfloat16).astype(jnp.float32)
        pt = adapter(pt_in, params["txt_wd"], params["txt_bd"],
                     params["txt_wu"], params["txt_bu"])

        def l2n(v):
            return v / jnp.maximum(jnp.linalg.norm(v, axis=-1, keepdims=True), 1e-12)

        return (l2n(pi) @ l2n(pt).T) * jnp.exp(params["logit_scale"][0])


if __name__ == "__main__":
    key = jax.random.PRNGKey(0)
    pkey, xkey = jax.random.split(key)

    B, C, H, W = 2, 4, 16, 16
    NUM_CLASSES = 16
    params = init_params(pkey, in_chans=C, spatial=H, proj_dim=64,
                         reduction=4, num_classes=NUM_CLASSES)
    padded = pad_params(params)
    pixel_values = jax.random.normal(xkey, (B, C, H, W), jnp.float32)

    logits = custom_clip_forward(padded, pixel_values, num_classes=NUM_CLASSES)
    logits = jax.block_until_ready(logits)

    ref = _reference_forward(params, pixel_values)
    assert logits.shape == (B, NUM_CLASSES)
    assert jnp.allclose(logits, ref, atol=2e-3, rtol=2e-3), "mismatch vs reference"

    print("KERNEL_OK")
</pallas_src>

<mosaic_0001>
module attributes {stable_mosaic.version = 11 : i64} {
  func.func @_custom_clip_kernel(%arg0: i32, %arg1: memref<8x1024xf32, #tpu.memory_space<vmem>>, %arg2: memref<1024x128xbf16, #tpu.memory_space<vmem>>, %arg3: memref<1x128xf32, #tpu.memory_space<vmem>>, %arg4: memref<128x16xbf16, #tpu.memory_space<vmem>>, %arg5: memref<1x16xf32, #tpu.memory_space<vmem>>, %arg6: memref<16x128xbf16, #tpu.memory_space<vmem>>, %arg7: memref<1x128xf32, #tpu.memory_space<vmem>>, %arg8: memref<16x128xbf16, #tpu.memory_space<vmem>>, %arg9: memref<128x16xbf16, #tpu.memory_space<vmem>>, %arg10: memref<1x16xf32, #tpu.memory_space<vmem>>, %arg11: memref<16x128xbf16, #tpu.memory_space<vmem>>, %arg12: memref<1x128xf32, #tpu.memory_space<vmem>>, %arg13: memref<1xf32, #tpu.memory_space<smem>>, %arg14: memref<8x128xf32, #tpu.memory_space<vmem>>) attributes {dimension_semantics = [#tpu.dimension_semantics<parallel>], iteration_bounds = array<i64: 1>, scalar_prefetch = 0 : i64, scratch_operands = 0 : i64, tpu.core_type = #tpu.core_type<tc>, window_params = [{transform_indices = @transform_0, window_bounds = array<i64: 8, 1024>}, {pipeline_mode = #tpu.pipeline_mode<synchronous>, transform_indices = @transform_1, window_bounds = array<i64: 1024, 128>}, {pipeline_mode = #tpu.pipeline_mode<synchronous>, transform_indices = @transform_2, window_bounds = array<i64: 1, 128>}, {pipeline_mode = #tpu.pipeline_mode<synchronous>, transform_indices = @transform_3, window_bounds = array<i64: 128, 16>}, {pipeline_mode = #tpu.pipeline_mode<synchronous>, transform_indices = @transform_4, window_bounds = array<i64: 1, 16>}, {pipeline_mode = #tpu.pipeline_mode<synchronous>, transform_indices = @transform_5, window_bounds = array<i64: 16, 128>}, {pipeline_mode = #tpu.pipeline_mode<synchronous>, transform_indices = @transform_6, window_bounds = array<i64: 1, 128>}, {pipeline_mode = #tpu.pipeline_mode<synchronous>, transform_indices = @transform_7, window_bounds = array<i64: 16, 128>}, {pipeline_mode = #tpu.pipeline_mode<synchronous>, transform_indices = @transform_8, window_bounds = array<i64: 128, 16>}, {pipeline_mode = #tpu.pipeline_mode<synchronous>, transform_indices = @transform_9, window_bounds = array<i64: 1, 16>}, {pipeline_mode = #tpu.pipeline_mode<synchronous>, transform_indices = @transform_10, window_bounds = array<i64: 16, 128>}, {pipeline_mode = #tpu.pipeline_mode<synchronous>, transform_indices = @transform_11, window_bounds = array<i64: 1, 128>}, {transform_indices = @transform_12, window_bounds = array<i64: 1>}, {transform_indices = @transform_13, window_bounds = array<i64: 8, 128>}]} {
    %c0 = arith.constant 0 : index
    %c0_0 = arith.constant 0 : index
    %0 = vector.load %arg1[%c0, %c0_0] : memref<8x1024xf32, #tpu.memory_space<vmem>>, vector<8x1024xf32>
    %1 = arith.truncf %0 : vector<8x1024xf32> to vector<8x1024xbf16>
    %c0_1 = arith.constant 0 : index
    %c0_2 = arith.constant 0 : index
    %2 = vector.load %arg2[%c0_1, %c0_2] : memref<1024x128xbf16, #tpu.memory_space<vmem>>, vector<1024x128xbf16>
    %cst = arith.constant dense<0.000000e+00> : vector<8x128xf32>
    %3 = tpu.matmul %1, %2, %cst {dimension_numbers = #tpu.dot_dimension_numbers<[1], [0], [0], [1], [0, 0, 1, 1], [], []>} : vector<8x1024xbf16>, vector<1024x128xbf16>, vector<8x128xf32> -> vector<8x128xf32>
    %c0_3 = arith.constant 0 : index
    %c0_4 = arith.constant 0 : index
    %4 = vector.load %arg3[%c0_3, %c0_4] : memref<1x128xf32, #tpu.memory_space<vmem>>, vector<1x128xf32>
    %5 = vector.broadcast %4 : vector<1x128xf32> to vector<8x128xf32>
    %6 = arith.addf %3, %5 : vector<8x128xf32>
    %7 = arith.truncf %6 : vector<8x128xf32> to vector<8x128xbf16>
    %c0_5 = arith.constant 0 : index
    %c0_6 = arith.constant 0 : index
    %8 = vector.load %arg4[%c0_5, %c0_6] : memref<128x16xbf16, #tpu.memory_space<vmem>>, vector<128x16xbf16>
    %cst_7 = arith.constant dense<0.000000e+00> : vector<8x16xf32>
    %9 = tpu.matmul %7, %8, %cst_7 {dimension_numbers = #tpu.dot_dimension_numbers<[1], [0], [0], [1], [0, 0, 1, 1], [], []>} : vector<8x128xbf16>, vector<128x16xbf16>, vector<8x16xf32> -> vector<8x16xf32>
    %c0_8 = arith.constant 0 : index
    %c0_9 = arith.constant 0 : index
    %10 = vector.load %arg5[%c0_8, %c0_9] : memref<1x16xf32, #tpu.memory_space<vmem>>, vector<1x16xf32>
    %11 = vector.broadcast %10 : vector<1x16xf32> to vector<8x16xf32>
    %12 = arith.addf %9, %11 : vector<8x16xf32>
    %cst_10 = arith.constant 0.000000e+00 : f32
    %13 = vector.broadcast %cst_10 : f32 to vector<8x16xf32>
    %14 = arith.maximumf %12, %13 : vector<8x16xf32>
    %15 = arith.truncf %14 : vector<8x16xf32> to vector<8x16xbf16>
    %c0_11 = arith.constant 0 : index
    %c0_12 = arith.constant 0 : index
    %16 = vector.load %arg6[%c0_11, %c0_12] : memref<16x128xbf16, #tpu.memory_space<vmem>>, vector<16x128xbf16>
    %cst_13 = arith.constant dense<0.000000e+00> : vector<8x128xf32>
    %17 = tpu.matmul %15, %16, %cst_13 {dimension_numbers = #tpu.dot_dimension_numbers<[1], [0], [0], [1], [0, 0, 1, 1], [], []>} : vector<8x16xbf16>, vector<16x128xbf16>, vector<8x128xf32> -> vector<8x128xf32>
    %c0_14 = arith.constant 0 : index
    %c0_15 = arith.constant 0 : index
    %18 = vector.load %arg7[%c0_14, %c0_15] : memref<1x128xf32, #tpu.memory_space<vmem>>, vector<1x128xf32>
    %19 = vector.broadcast %18 : vector<1x128xf32> to vector<8x128xf32>
    %20 = arith.addf %17, %19 : vector<8x128xf32>
    %21 = arith.addf %6, %20 : vector<8x128xf32>
    %c0_16 = arith.constant 0 : index
    %c0_17 = arith.constant 0 : index
    %22 = vector.load %arg8[%c0_16, %c0_17] : memref<16x128xbf16, #tpu.memory_space<vmem>>, vector<16x128xbf16>
    %23 = arith.extf %22 : vector<16x128xbf16> to vector<16x128xf32>
    %24 = arith.truncf %23 : vector<16x128xf32> to vector<16x128xbf16>
    %c0_18 = arith.constant 0 : index
    %c0_19 = arith.constant 0 : index
    %25 = vector.load %arg9[%c0_18, %c0_19] : memref<128x16xbf16, #tpu.memory_space<vmem>>, vector<128x16xbf16>
    %cst_20 = arith.constant dense<0.000000e+00> : vector<16x16xf32>
    %26 = tpu.matmul %24, %25, %cst_20 {dimension_numbers = #tpu.dot_dimension_numbers<[1], [0], [0], [1], [0, 0, 1, 1], [], []>} : vector<16x128xbf16>, vector<128x16xbf16>, vector<16x16xf32> -> vector<16x16xf32>
    %c0_21 = arith.constant 0 : index
    %c0_22 = arith.constant 0 : index
    %27 = vector.load %arg10[%c0_21, %c0_22] : memref<1x16xf32, #tpu.memory_space<vmem>>, vector<1x16xf32>
    %28 = vector.broadcast %27 : vector<1x16xf32> to vector<16x16xf32>
    %29 = arith.addf %26, %28 : vector<16x16xf32>
    %cst_23 = arith.constant 0.000000e+00 : f32
    %30 = vector.broadcast %cst_23 : f32 to vector<16x16xf32>
    %31 = arith.maximumf %29, %30 : vector<16x16xf32>
    %32 = arith.truncf %31 : vector<16x16xf32> to vector<16x16xbf16>
    %c0_24 = arith.constant 0 : index
    %c0_25 = arith.constant 0 : index
    %33 = vector.load %arg11[%c0_24, %c0_25] : memref<16x128xbf16, #tpu.memory_space<vmem>>, vector<16x128xbf16>
    %cst_26 = arith.constant dense<0.000000e+00> : vector<16x128xf32>
    %34 = tpu.matmul %32, %33, %cst_26 {dimension_numbers = #tpu.dot_dimension_numbers<[1], [0], [0], [1], [0, 0, 1, 1], [], []>} : vector<16x16xbf16>, vector<16x128xbf16>, vector<16x128xf32> -> vector<16x128xf32>
    %c0_27 = arith.constant 0 : index
    %c0_28 = arith.constant 0 : index
    %35 = vector.load %arg12[%c0_27, %c0_28] : memref<1x128xf32, #tpu.memory_space<vmem>>, vector<1x128xf32>
    %36 = vector.broadcast %35 : vector<1x128xf32> to vector<16x128xf32>
    %37 = arith.addf %34, %36 : vector<16x128xf32>
    %38 = arith.addf %23, %37 : vector<16x128xf32>
    %39 = arith.mulf %21, %21 : vector<8x128xf32>
    %cst_29 = arith.constant dense<0.000000e+00> : vector<8xf32>
    %40 = vector.multi_reduction <add>, %39, %cst_29 [1] : vector<8x128xf32> to vector<8xf32>
    %41 = vector.shape_cast %40 : vector<8xf32> to vector<8x1xf32>
    %cst_30 = arith.constant 1.000000e-24 : f32
    %42 = vector.broadcast %cst_30 : f32 to vector<8x1xf32>
    %43 = arith.maximumf %41, %42 : vector<8x1xf32>
    %44 = math.rsqrt %43 : vector<8x1xf32>
    %45 = vector.broadcast %44 : vector<8x1xf32> to vector<8x128xf32>
    %46 = arith.mulf %21, %45 : vector<8x128xf32>
    %47 = arith.mulf %38, %38 : vector<16x128xf32>
    %cst_31 = arith.constant dense<0.000000e+00> : vector<16xf32>
    %48 = vector.multi_reduction <add>, %47, %cst_31 [1] : vector<16x128xf32> to vector<16xf32>
    %49 = vector.shape_cast %48 : vector<16xf32> to vector<16x1xf32>
    %cst_32 = arith.constant 1.000000e-24 : f32
    %50 = vector.broadcast %cst_32 : f32 to vector<16x1xf32>
    %51 = arith.maximumf %49, %50 : vector<16x1xf32>
    %52 = math.rsqrt %51 : vector<16x1xf32>
    %53 = vector.broadcast %52 : vector<16x1xf32> to vector<16x128xf32>
    %54 = arith.mulf %38, %53 : vector<16x128xf32>
    %cst_33 = arith.constant 0.000000e+00 : f32
    %55 = vector.broadcast %cst_33 : f32 to vector<112x128xf32>
    %56 = tpu.concatenate %54, %55 in 0 : vector<16x128xf32>, vector<112x128xf32> -> vector<128x128xf32>
    %cst_34 = arith.constant dense<0.000000e+00> : vector<8x128xf32>
    %57 = tpu.matmul %46, %56, %cst_34 {dimension_numbers = #tpu.dot_dimension_numbers<[1], [1], [0], [0], [0, 0, 1, 0], [], []>} : vector<8x128xf32>, vector<128x128xf32>, vector<8x128xf32> -> vector<8x128xf32>
    %c0_35 = arith.constant 0 : index
    %58 = memref.load %arg13[%c0_35] : memref<1xf32, #tpu.memory_space<smem>>
    %59 = math.exp %58 : f32
    %60 = vector.broadcast %59 : f32 to vector<8x128xf32>
    %61 = arith.mulf %57, %60 : vector<8x128xf32>
    %c0_36 = arith.constant 0 : index
    %c0_37 = arith.constant 0 : index
    %62 = vector.load %arg14[%c0_36, %c0_37] : memref<8x128xf32, #tpu.memory_space<vmem>>, vector<8x128xf32>
    tpu.vector_store %arg14[%c0_36, %c0_37], %61 {strides = array<i32>} : memref<8x128xf32, #tpu.memory_space<vmem>>, vector<8x128xf32>,
    return
  }
  func.func @transform_0(%arg0: i32) -> (i32, i32) {
    %c0_i32 = arith.constant 0 : i32
    %c0_i32_0 = arith.constant 0 : i32
    return %arg0, %c0_i32 : i32, i32
  }
  func.func @transform_1(%arg0: i32) -> (i32, i32) {
    %c0_i32 = arith.constant 0 : i32
    %c0_i32_0 = arith.constant 0 : i32
    %c0_i32_1 = arith.constant 0 : i32
    return %c0_i32, %c0_i32_0 : i32, i32
  }
  func.func @transform_2(%arg0: i32) -> (i32, i32) {
    %c0_i32 = arith.constant 0 : i32
    %c0_i32_0 = arith.constant 0 : i32
    %c0_i32_1 = arith.constant 0 : i32
    return %c0_i32, %c0_i32_0 : i32, i32
  }
  func.func @transform_3(%arg0: i32) -> (i32, i32) {
    %c0_i32 = arith.constant 0 : i32
    %c0_i32_0 = arith.constant 0 : i32
    %c0_i32_1 = arith.constant 0 : i32
    return %c0_i32, %c0_i32_0 : i32, i32
  }
  func.func @transform_4(%arg0: i32) -> (i32, i32) {
    %c0_i32 = arith.constant 0 : i32
    %c0_i32_0 = arith.constant 0 : i32
    %c0_i32_1 = arith.constant 0 : i32
    return %c0_i32, %c0_i32_0 : i32, i32
  }
  func.func @transform_5(%arg0: i32) -> (i32, i32) {
    %c0_i32 = arith.constant 0 : i32
    %c0_i32_0 = arith.constant 0 : i32
    %c0_i32_1 = arith.constant 0 : i32
    return %c0_i32, %c0_i32_0 : i32, i32
  }
  func.func @transform_6(%arg0: i32) -> (i32, i32) {
    %c0_i32 = arith.constant 0 : i32
    %c0_i32_0 = arith.constant 0 : i32
    %c0_i32_1 = arith.constant 0 : i32
    return %c0_i32, %c0_i32_0 : i32, i32
  }
  func.func @transform_7(%arg0: i32) -> (i32, i32) {
    %c0_i32 = arith.constant 0 : i32
    %c0_i32_0 = arith.constant 0 : i32
    %c0_i32_1 = arith.constant 0 : i32
    return %c0_i32, %c0_i32_0 : i32, i32
  }
  func.func @transform_8(%arg0: i32) -> (i32, i32) {
    %c0_i32 = arith.constant 0 : i32
    %c0_i32_0 = arith.constant 0 : i32
    %c0_i32_1 = arith.constant 0 : i32
    return %c0_i32, %c0_i32_0 : i32, i32
  }
  func.func @transform_9(%arg0: i32) -> (i32, i32) {
    %c0_i32 = arith.constant 0 : i32
    %c0_i32_0 = arith.constant 0 : i32
    %c0_i32_1 = arith.constant 0 : i32
    return %c0_i32, %c0_i32_0 : i32, i32
  }
  func.func @transform_10(%arg0: i32) -> (i32, i32) {
    %c0_i32 = arith.constant 0 : i32
    %c0_i32_0 = arith.constant 0 : i32
    %c0_i32_1 = arith.constant 0 : i32
    return %c0_i32, %c0_i32_0 : i32, i32
  }
  func.func @transform_11(%arg0: i32) -> (i32, i32) {
    %c0_i32 = arith.constant 0 : i32
    %c0_i32_0 = arith.constant 0 : i32
    %c0_i32_1 = arith.constant 0 : i32
    return %c0_i32, %c0_i32_0 : i32, i32
  }
  func.func @transform_12(%arg0: i32) -> i32 {
    %c0_i32 = arith.constant 0 : i32
    %c0_i32_0 = arith.constant 0 : i32
    return %c0_i32 : i32
  }
  func.func @transform_13(%arg0: i32) -> (i32, i32) {
    %c0_i32 = arith.constant 0 : i32
    %c0_i32_0 = arith.constant 0 : i32
    return %arg0, %c0_i32 : i32, i32
  }
}

</mosaic_0001>

<llo_original>
// kernel: custom_clip_forward.1
$region0: #{custom_clip_forward.1}
  #allocation0 [shape = 'u32[]', space=smem, size = 0x4, offset = 0x4, fixed_abs, tag = 'smem constant byte address 0x4 - core index']
  #allocation1 [shape = 'u32[144,128]{1,0:T(1,128)}', space=vmem, size = 0x12000, scoped, tag = 'internal scratch']
  #allocation2 [shape = 'f32[1]{0:T(128)S(6)}', space=smem, size = 0x200, scoped, tag = 'scoped memory for custom_clip_forward.1']
  %s0 = inlined_call_operand.vmem [shape: f32[8,1024], index: 0, kind: input, shape index: {}]
  %s1 = inlined_call_operand.hbm [shape: bf16[1024,128], index: 1, kind: input, shape index: {}]
  %s2 = inlined_call_operand.vmem [shape: f32[1,128], index: 2, kind: input, shape index: {}]
  %s3 = inlined_call_operand.vmem [shape: bf16[128,16], index: 3, kind: input, shape index: {}]
  %s4 = inlined_call_operand.vmem [shape: f32[1,16], index: 4, kind: input, shape index: {}]
  %s5 = inlined_call_operand.vmem [shape: bf16[16,128], index: 5, kind: input, shape index: {}]
  %s6 = inlined_call_operand.vmem [shape: f32[1,128], index: 6, kind: input, shape index: {}]
  %s7 = inlined_call_operand.vmem [shape: bf16[16,128], index: 7, kind: input, shape index: {}]
  %s8 = inlined_call_operand.vmem [shape: bf16[128,16], index: 8, kind: input, shape index: {}]
  %s9 = inlined_call_operand.vmem [shape: f32[1,16], index: 9, kind: input, shape index: {}]
  %s10 = inlined_call_operand.vmem [shape: bf16[16,128], index: 10, kind: input, shape index: {}]
  %s11 = inlined_call_operand.vmem [shape: f32[1,128], index: 11, kind: input, shape index: {}]
  %s12 = inlined_call_operand.<no memory space> [shape: f32[1], index: 12, kind: input, shape index: {}]
  %s13 = inlined_call_operand.vmem [shape: f32[8,128], index: 13, kind: output, shape index: {}]
  %s14 = sld [smem:[#allocation0]]
  $region66: #{custom_clip_forward.1} parent=0
    _
  %s16 = ssub.s32 1, %s14
  %s17 = scalar_select 0, %s16, %s14
  %18 = sst [smem:[#allocation2]] %s12
  $region1: #{custom_clip_forward.1} parent=0
    #allocation3 [shape = 'u8[262144]{0}', space=vmem, size = 0x40000, scoped, tag = 'input window, operand 1, single buffered']
    #allocation4 [shape = 's32[1]{0}', space=sflag, size = 0x4, scoped, tag = 'scoped memory for custom_clip_forward.1']
    %19 = vsyncpa [#allocation4], 0
    // Predicated region
    $region2: #{custom_clip_forward.1} parent=1 // pred_check
      _
    $region3: #{custom_clip_forward.1} parent=1 // pred_check_branch
      %21 = sbr.rel (0) target = $region5
    $region4: #{custom_clip_forward.1} parent=1 // pred_region
      _
    $region5: #{custom_clip_forward.1} parent=1 // pred_fallthru
      _
    // Predicated region
    $region6: #{custom_clip_forward.1} parent=1 // pred_check
      _
    $region7: #{custom_clip_forward.1} parent=1 // pred_check_branch
      %23 = sbr.rel (0) target = $region9
    $region8: #{custom_clip_forward.1} parent=1 // pred_region
      %s25 = ssub.s32 8192, 8192
      %26 = vsyncadd [#allocation4], %s25
      %s27 = sshll.u32 [#allocation3], 4
      %s28 = int_to_ptr.vmem [resolvable:$true] %s27
      %33 = dma.hbm_to_vmem [thread:$0]  %s1, 8192, %s28, [#allocation4], 64, 64, 4
    $region9: #{custom_clip_forward.1} parent=1 // pred_fallthru
      _
    // Predicated region
    $region10: #{custom_clip_forward.1} parent=1 // pred_check
      _
    $region11: #{custom_clip_forward.1} parent=1 // pred_check_branch
      %35 = sbr.rel (0) target = $region13
    $region12: #{custom_clip_forward.1} parent=1 // pred_region
      _
    $region13: #{custom_clip_forward.1} parent=1 // pred_fallthru
      _
    // Predicated region
    $region14: #{custom_clip_forward.1} parent=1 // pred_check
      _
    $region15: #{custom_clip_forward.1} parent=1 // pred_check_branch
      %37 = sbr.rel (0) target = $region17
    $region16: #{custom_clip_forward.1} parent=1 // pred_region
      _
    $region17: #{custom_clip_forward.1} parent=1 // pred_fallthru
      _
    // Predicated region
    $region18: #{custom_clip_forward.1} parent=1 // pred_check
      _
    $region19: #{custom_clip_forward.1} parent=1 // pred_check_branch
      %39 = sbr.rel (0) target = $region21
    $region20: #{custom_clip_forward.1} parent=1 // pred_region
      _
    $region21: #{custom_clip_forward.1} parent=1 // pred_fallthru
      _
    // Predicated region
    $region22: #{custom_clip_forward.1} parent=1 // pred_check
      _
    $region23: #{custom_clip_forward.1} parent=1 // pred_check_branch
      %41 = sbr.rel (0) target = $region25
    $region24: #{custom_clip_forward.1} parent=1 // pred_region
      _
    $region25: #{custom_clip_forward.1} parent=1 // pred_fallthru
      _
    // Predicated region
    $region26: #{custom_clip_forward.1} parent=1 // pred_check
      _
    $region27: #{custom_clip_forward.1} parent=1 // pred_check_branch
      %43 = sbr.rel (0) target = $region29
    $region28: #{custom_clip_forward.1} parent=1 // pred_region
      _
    $region29: #{custom_clip_forward.1} parent=1 // pred_fallthru
      _
    // Predicated region
    $region30: #{custom_clip_forward.1} parent=1 // pred_check
      _
    $region31: #{custom_clip_forward.1} parent=1 // pred_check_branch
      %45 = sbr.rel (0) target = $region33
    $region32: #{custom_clip_forward.1} parent=1 // pred_region
      _
    $region33: #{custom_clip_forward.1} parent=1 // pred_fallthru
      _
    // Predicated region
    $region34: #{custom_clip_forward.1} parent=1 // pred_check
      _
    $region35: #{custom_clip_forward.1} parent=1 // pred_check_branch
      %47 = sbr.rel (0) target = $region37
    $region36: #{custom_clip_forward.1} parent=1 // pred_region
      _
    $region37: #{custom_clip_forward.1} parent=1 // pred_fallthru
      _
    // Predicated region
    $region38: #{custom_clip_forward.1} parent=1 // pred_check
      _
    $region39: #{custom_clip_forward.1} parent=1 // pred_check_branch
      %49 = sbr.rel (0) target = $region41
    $region40: #{custom_clip_forward.1} parent=1 // pred_region
      _
    $region41: #{custom_clip_forward.1} parent=1 // pred_fallthru
      _
    // Predicated region
    $region42: #{custom_clip_forward.1} parent=1 // pred_check
      _
    $region43: #{custom_clip_forward.1} parent=1 // pred_check_branch
      %51 = sbr.rel (0) target = $region45
    $region44: #{custom_clip_forward.1} parent=1 // pred_region
      _
    $region45: #{custom_clip_forward.1} parent=1 // pred_fallthru
      _
    // Predicated region
    $region46: #{custom_clip_forward.1} parent=1 // pred_check
      _
    $region47: #{custom_clip_forward.1} parent=1 // pred_check_branch
      %53 = sbr.rel (0) target = $region49
    $region48: #{custom_clip_forward.1} parent=1 // pred_region
      _
    $region49: #{custom_clip_forward.1} parent=1 // pred_fallthru
      _
    // Predicated region
    $region50: #{custom_clip_forward.1} parent=1 // pred_check
      _
    $region51: #{custom_clip_forward.1} parent=1 // pred_check_branch
      %55 = sbr.rel (0) target = $region53
    $region52: #{custom_clip_forward.1} parent=1 // pred_region
      _
    $region53: #{custom_clip_forward.1} parent=1 // pred_fallthru
      _
    // Predicated region
    $region54: #{custom_clip_forward.1} parent=1 // pred_check
      _
    $region55: #{custom_clip_forward.1} parent=1 // pred_check_branch
      %57 = sbr.rel (0) target = $region57
    $region56: #{custom_clip_forward.1} parent=1 // pred_region
      %58 = dma.done [#allocation4], 8192
    $region57: #{custom_clip_forward.1} parent=1 // pred_fallthru
      _
    %v60 = vld [vmem:[%s0] sm:$0xff]
    %v61 = vld [vmem:[%s0 + $0x8] sm:$0xff]
    %v62 = vld [vmem:[%s0 + $0x10] sm:$0xff]
    %v63 = vld [vmem:[%s0 + $0x18] sm:$0xff]
    %v64 = vld [vmem:[%s0 + $0x20] sm:$0xff]
    %v65 = vld [vmem:[%s0 + $0x28] sm:$0xff]
    %v66 = vld [vmem:[%s0 + $0x30] sm:$0xff]
    %v67 = vld [vmem:[%s0 + $0x38] sm:$0xff]
    %v68 = vpack.c.bf16 %v60, %v60
    %v69 = vpack.c.bf16 %v61, %v61
    %v70 = vpack.c.bf16 %v62, %v62
    %v71 = vpack.c.bf16 %v63, %v63
    %v72 = vpack.c.bf16 %v64, %v64
    %v73 = vpack.c.bf16 %v65, %v65
    %v74 = vpack.c.bf16 %v66, %v66
    %v75 = vpack.c.bf16 %v67, %v67
    %v76 = vld [vmem:[#allocation3] sm:$0xf]
    %v77 = vld [vmem:[#allocation3 + $0x4] sm:$0xf]
    %v78 = vld [vmem:[#allocation3 + $0x8] sm:$0xf]
    %v79 = vld [vmem:[#allocation3 + $0xc] sm:$0xf]
    %v80 = vld [vmem:[#allocation3 + $0x10] sm:$0xf]
    %v81 = vld [vmem:[#allocation3 + $0x14] sm:$0xf]
    %v82 = vld [vmem:[#allocation3 + $0x18] sm:$0xf]
    %v83 = vld [vmem:[#allocation3 + $0x1c] sm:$0xf]
    %v84 = vld [vmem:[#allocation3 + $0x20] sm:$0xf]
    %v85 = vld [vmem:[#allocation3 + $0x24] sm:$0xf]
    %v86 = vld [vmem:[#allocation3 + $0x28] sm:$0xf]
    %v87 = vld [vmem:[#allocation3 + $0x2c] sm:$0xf]
    %v88 = vld [vmem:[#allocation3 + $0x30] sm:$0xf]
    %v89 = vld [vmem:[#allocation3 + $0x34] sm:$0xf]
    %v90 = vld [vmem:[#allocation3 + $0x38] sm:$0xf]
    %v91 = vld [vmem:[#allocation3 + $0x3c] sm:$0xf]
    %v92 = vld [vmem:[#allocation3 + $0x40] sm:$0xf]
    %v93 = vld [vmem:[#allocation3 + $0x44] sm:$0xf]
    %v94 = vld [vmem:[#allocation3 + $0x48] sm:$0xf]
    %v95 = vld [vmem:[#allocation3 + $0x4c] sm:$0xf]
    %v96 = vld [vmem:[#allocation3 + $0x50] sm:$0xf]
    %v97 = vld [vmem:[#allocation3 + $0x54] sm:$0xf]
    %v98 = vld [vmem:[#allocation3 + $0x58] sm:$0xf]
    %v99 = vld [vmem:[#allocation3 + $0x5c] sm:$0xf]
    %v100 = vld [vmem:[#allocation3 + $0x60] sm:$0xf]
    %v101 = vld [vmem:[#allocation3 + $0x64] sm:$0xf]
    %v102 = vld [vmem:[#allocation3 + $0x68] sm:$0xf]
    %v103 = vld [vmem:[#allocation3 + $0x6c] sm:$0xf]
    %v104 = vld [vmem:[#allocation3 + $0x70] sm:$0xf]
    %v105 = vld [vmem:[#allocation3 + $0x74] sm:$0xf]
    %v106 = vld [vmem:[#allocation3 + $0x78] sm:$0xf]
    %v107 = vld [vmem:[#allocation3 + $0x7c] sm:$0xf]
    %v108 = vld [vmem:[#allocation3 + $0x80] sm:$0xf]
    %v109 = vld [vmem:[#allocation3 + $0x84] sm:$0xf]
    %v110 = vld [vmem:[#allocation3 + $0x88] sm:$0xf]
    %v111 = vld [vmem:[#allocation3 + $0x8c] sm:$0xf]
    %v112 = vld [vmem:[#allocation3 + $0x90] sm:$0xf]
    %v113 = vld [vmem:[#allocation3 + $0x94] sm:$0xf]
    %v114 = vld [vmem:[#allocation3 + $0x98] sm:$0xf]
    %v115 = vld [vmem:[#allocation3 + $0x9c] sm:$0xf]
    %v116 = vld [vmem:[#allocation3 + $0xa0] sm:$0xf]
    %v117 = vld [vmem:[#allocation3 + $0xa4] sm:$0xf]
    %v118 = vld [vmem:[#allocation3 + $0xa8] sm:$0xf]
    %v119 = vld [vmem:[#allocation3 + $0xac] sm:$0xf]
    %v120 = vld [vmem:[#allocation3 + $0xb0] sm:$0xf]
    %v121 = vld [vmem:[#allocation3 + $0xb4] sm:$0xf]
    %v122 = vld [vmem:[#allocation3 + $0xb8] sm:$0xf]
    %v123 = vld [vmem:[#allocation3 + $0xbc] sm:$0xf]
    %v124 = vld [vmem:[#allocation3 + $0xc0] sm:$0xf]
    %v125 = vld [vmem:[#allocation3 + $0xc4] sm:$0xf]
    %v126 = vld [vmem:[#allocation3 + $0xc8] sm:$0xf]
    %v127 = vld [vmem:[#allocation3 + $0xcc] sm:$0xf]
    %v128 = vld [vmem:[#allocation3 + $0xd0] sm:$0xf]
    %v129 = vld [vmem:[#allocation3 + $0xd4] sm:$0xf]
    %v130 = vld [vmem:[#allocation3 + $0xd8] sm:$0xf]
    %v131 = vld [vmem:[#allocation3 + $0xdc] sm:$0xf]
    %v132 = vld [vmem:[#allocation3 + $0xe0] sm:$0xf]
    %v133 = vld [vmem:[#allocation3 + $0xe4] sm:$0xf]
    %v134 = vld [vmem:[#allocation3 + $0xe8] sm:$0xf]
    %v135 = vld [vmem:[#allocation3 + $0xec] sm:$0xf]
    %v136 = vld [vmem:[#allocation3 + $0xf0] sm:$0xf]
    %v137 = vld [vmem:[#allocation3 + $0xf4] sm:$0xf]
    %v138 = vld [vmem:[#allocation3 + $0xf8] sm:$0xf]
    %v139 = vld [vmem:[#allocation3 + $0xfc] sm:$0xf]
    %v140 = vld [vmem:[#allocation3 + $0x100] sm:$0xf]
    %v141 = vld [vmem:[#allocation3 + $0x104] sm:$0xf]
    %v142 = vld [vmem:[#allocation3 + $0x108] sm:$0xf]
    %v143 = vld [vmem:[#allocation3 + $0x10c] sm:$0xf]
    %v144 = vld [vmem:[#allocation3 + $0x110] sm:$0xf]
    %v145 = vld [vmem:[#allocation3 + $0x114] sm:$0xf]
    %v146 = vld [vmem:[#allocation3 + $0x118] sm:$0xf]
    %v147 = vld [vmem:[#allocation3 + $0x11c] sm:$0xf]
    %v148 = vld [vmem:[#allocation3 + $0x120] sm:$0xf]
    %v149 = vld [vmem:[#allocation3 + $0x124] sm:$0xf]
    %v150 = vld [vmem:[#allocation3 + $0x128] sm:$0xf]
    %v151 = vld [vmem:[#allocation3 + $0x12c] sm:$0xf]
    %v152 = vld [vmem:[#allocation3 + $0x130] sm:$0xf]
    %v153 = vld [vmem:[#allocation3 + $0x134] sm:$0xf]
    %v154 = vld [vmem:[#allocation3 + $0x138] sm:$0xf]
    %v155 = vld [vmem:[#allocation3 + $0x13c] sm:$0xf]
    %v156 = vld [vmem:[#allocation3 + $0x140] sm:$0xf]
    %v157 = vld [vmem:[#allocation3 + $0x144] sm:$0xf]
    %v158 = vld [vmem:[#allocation3 + $0x148] sm:$0xf]
    %v159 = vld [vmem:[#allocation3 + $0x14c] sm:$0xf]
    %v160 = vld [vmem:[#allocation3 + $0x150] sm:$0xf]
    %v161 = vld [vmem:[#allocation3 + $0x154] sm:$0xf]
    %v162 = vld [vmem:[#allocation3 + $0x158] sm:$0xf]
    %v163 = vld [vmem:[#allocation3 + $0x15c] sm:$0xf]
    %v164 = vld [vmem:[#allocation3 + $0x160] sm:$0xf]
    %v165 = vld [vmem:[#allocation3 + $0x164] sm:$0xf]
    %v166 = vld [vmem:[#allocation3 + $0x168] sm:$0xf]
    %v167 = vld [vmem:[#allocation3 + $0x16c] sm:$0xf]
    %v168 = vld [vmem:[#allocation3 + $0x170] sm:$0xf]
    %v169 = vld [vmem:[#allocation3 + $0x174] sm:$0xf]
    %v170 = vld [vmem:[#allocation3 + $0x178] sm:$0xf]
    %v171 = vld [vmem:[#allocation3 + $0x17c] sm:$0xf]
    %v172 = vld [vmem:[#allocation3 + $0x180] sm:$0xf]
    %v173 = vld [vmem:[#allocation3 + $0x184] sm:$0xf]
    %v174 = vld [vmem:[#allocation3 + $0x188] sm:$0xf]
    %v175 = vld [vmem:[#allocation3 + $0x18c] sm:$0xf]
    %v176 = vld [vmem:[#allocation3 + $0x190] sm:$0xf]
    %v177 = vld [vmem:[#allocation3 + $0x194] sm:$0xf]
    %v178 = vld [vmem:[#allocation3 + $0x198] sm:$0xf]
    %v179 = vld [vmem:[#allocation3 + $0x19c] sm:$0xf]
    %v180 = vld [vmem:[#allocation3 + $0x1a0] sm:$0xf]
    %v181 = vld [vmem:[#allocation3 + $0x1a4] sm:$0xf]
    %v182 = vld [vmem:[#allocation3 + $0x1a8] sm:$0xf]
    %v183 = vld [vmem:[#allocation3 + $0x1ac] sm:$0xf]
    %v184 = vld [vmem:[#allocation3 + $0x1b0] sm:$0xf]
    %v185 = vld [vmem:[#allocation3 + $0x1b4] sm:$0xf]
    %v186 = vld [vmem:[#allocation3 + $0x1b8] sm:$0xf]
    %v187 = vld [vmem:[#allocation3 + $0x1bc] sm:$0xf]
    %v188 = vld [vmem:[#allocation3 + $0x1c0] sm:$0xf]
    %v189 = vld [vmem:[#allocation3 + $0x1c4] sm:$0xf]
    %v190 = vld [vmem:[#allocation3 + $0x1c8] sm:$0xf]
    %v191 = vld [vmem:[#allocation3 + $0x1cc] sm:$0xf]
    %v192 = vld [vmem:[#allocation3 + $0x1d0] sm:$0xf]
    %v193 = vld [vmem:[#allocation3 + $0x1d4] sm:$0xf]
    %v194 = vld [vmem:[#allocation3 + $0x1d8] sm:$0xf]
    %v195 = vld [vmem:[#allocation3 + $0x1dc] sm:$0xf]
    %v196 = vld [vmem:[#allocation3 + $0x1e0] sm:$0xf]
    %v197 = vld [vmem:[#allocation3 + $0x1e4] sm:$0xf]
    %v198 = vld [vmem:[#allocation3 + $0x1e8] sm:$0xf]
    %v199 = vld [vmem:[#allocation3 + $0x1ec] sm:$0xf]
    %v200 = vld [vmem:[#allocation3 + $0x1f0] sm:$0xf]
    %v201 = vld [vmem:[#allocation3 + $0x1f4] sm:$0xf]
    %v202 = vld [vmem:[#allocation3 + $0x1f8] sm:$0xf]
    %v203 = vld [vmem:[#allocation3 + $0x1fc] sm:$0xf]
    %v204 = vld [vmem:[%s2] sm:$0x1]
    %v206 = vlaneseq
    %v207 = vshrl.u32 %v206, 7
    %v208 = vsub.s32 0, %v207
    %v209 = vrot.slane %v204, %v208
    %v339 = vunpack.c.l.b16 %v76
    %v340 = vunpack.c.l.b16 %v77
    %v341 = vunpack.c.l.b16 %v78
    %v342 = vunpack.c.l.b16 %v79
    %v343 = vunpack.c.l.b16 %v80
    %v344 = vunpack.c.l.b16 %v81
    %v345 = vunpack.c.l.b16 %v82
    %v346 = vunpack.c.l.b16 %v83
    %v347 = vunpack.c.l.b16 %v84
    %v348 = vunpack.c.l.b16 %v85
    %v349 = vunpack.c.l.b16 %v86
    %v350 = vunpack.c.l.b16 %v87
    %v351 = vunpack.c.l.b16 %v88
    %v352 = vunpack.c.l.b16 %v89
    %v353 = vunpack.c.l.b16 %v90
    %v354 = vunpack.c.l.b16 %v91
    %v355 = vunpack.c.l.b16 %v92
    %v356 = vunpack.c.l.b16 %v93
    %v357 = vunpack.c.l.b16 %v94
    %v358 = vunpack.c.l.b16 %v95
    %v359 = vunpack.c.l.b16 %v96
    %v360 = vunpack.c.l.b16 %v97
    %v361 = vunpack.c.l.b16 %v98
    %v362 = vunpack.c.l.b16 %v99
    %v363 = vunpack.c.l.b16 %v100
    %v364 = vunpack.c.l.b16 %v101
    %v365 = vunpack.c.l.b16 %v102
    %v366 = vunpack.c.l.b16 %v103
    %v367 = vunpack.c.l.b16 %v104
    %v368 = vunpack.c.l.b16 %v105
    %v369 = vunpack.c.l.b16 %v106
    %v370 = vunpack.c.l.b16 %v107
    %v371 = vunpack.c.l.b16 %v108
    %v372 = vunpack.c.l.b16 %v109
    %v373 = vunpack.c.l.b16 %v110
    %v374 = vunpack.c.l.b16 %v111
    %v375 = vunpack.c.l.b16 %v112
    %v376 = vunpack.c.l.b16 %v113
    %v377 = vunpack.c.l.b16 %v114
    %v378 = vunpack.c.l.b16 %v115
    %v379 = vunpack.c.l.b16 %v116
    %v380 = vunpack.c.l.b16 %v117
    %v381 = vunpack.c.l.b16 %v118
    %v382 = vunpack.c.l.b16 %v119
    %v383 = vunpack.c.l.b16 %v120
    %v384 = vunpack.c.l.b16 %v121
    %v385 = vunpack.c.l.b16 %v122
    %v386 = vunpack.c.l.b16 %v123
    %v387 = vunpack.c.l.b16 %v124
    %v388 = vunpack.c.l.b16 %v125
    %v389 = vunpack.c.l.b16 %v126
    %v390 = vunpack.c.l.b16 %v127
    %v391 = vunpack.c.l.b16 %v128
    %v392 = vunpack.c.l.b16 %v129
    %v393 = vunpack.c.l.b16 %v130
    %v394 = vunpack.c.l.b16 %v131
    %v395 = vunpack.c.l.b16 %v132
    %v396 = vunpack.c.l.b16 %v133
    %v397 = vunpack.c.l.b16 %v134
    %v398 = vunpack.c.l.b16 %v135
    %v399 = vunpack.c.l.b16 %v136
    %v400 = vunpack.c.l.b16 %v137
    %v401 = vunpack.c.l.b16 %v138
    %v402 = vunpack.c.l.b16 %v139
    %v403 = vunpack.c.l.b16 %v140
    %v404 = vunpack.c.l.b16 %v141
    %v405 = vunpack.c.l.b16 %v142
    %v406 = vunpack.c.l.b16 %v143
    %v407 = vunpack.c.l.b16 %v144
    %v408 = vunpack.c.l.b16 %v145
    %v409 = vunpack.c.l.b16 %v146
    %v410 = vunpack.c.l.b16 %v147
    %v411 = vunpack.c.l.b16 %v148
    %v412 = vunpack.c.l.b16 %v149
    %v413 = vunpack.c.l.b16 %v150
    %v414 = vunpack.c.l.b16 %v151
    %v415 = vunpack.c.l.b16 %v152
    %v416 = vunpack.c.l.b16 %v153
    %v417 = vunpack.c.l.b16 %v154
    %v418 = vunpack.c.l.b16 %v155
    %v419 = vunpack.c.l.b16 %v156
    %v420 = vunpack.c.l.b16 %v157
    %v421 = vunpack.c.l.b16 %v158
    %v422 = vunpack.c.l.b16 %v159
    %v423 = vunpack.c.l.b16 %v160
    %v424 = vunpack.c.l.b16 %v161
    %v425 = vunpack.c.l.b16 %v162
    %v426 = vunpack.c.l.b16 %v163
    %v427 = vunpack.c.l.b16 %v164
    %v428 = vunpack.c.l.b16 %v165
    %v429 = vunpack.c.l.b16 %v166
    %v430 = vunpack.c.l.b16 %v167
    %v431 = vunpack.c.l.b16 %v168
    %v432 = vunpack.c.l.b16 %v169
    %v433 = vunpack.c.l.b16 %v170
    %v434 = vunpack.c.l.b16 %v171
    %v435 = vunpack.c.l.b16 %v172
    %v436 = vunpack.c.l.b16 %v173
    %v437 = vunpack.c.l.b16 %v174
    %v438 = vunpack.c.l.b16 %v175
    %v439 = vunpack.c.l.b16 %v176
    %v440 = vunpack.c.l.b16 %v177
    %v441 = vunpack.c.l.b16 %v178
    %v442 = vunpack.c.l.b16 %v179
    %v443 = vunpack.c.l.b16 %v180
    %v444 = vunpack.c.l.b16 %v181
    %v445 = vunpack.c.l.b16 %v182
    %v446 = vunpack.c.l.b16 %v183
    %v447 = vunpack.c.l.b16 %v184
    %v448 = vunpack.c.l.b16 %v185
    %v449 = vunpack.c.l.b16 %v186
    %v450 = vunpack.c.l.b16 %v187
    %v451 = vunpack.c.l.b16 %v188
    %v452 = vunpack.c.l.b16 %v189
    %v453 = vunpack.c.l.b16 %v190
    %v454 = vunpack.c.l.b16 %v191
    %v455 = vunpack.c.l.b16 %v192
    %v456 = vunpack.c.l.b16 %v193
    %v457 = vunpack.c.l.b16 %v194
    %v458 = vunpack.c.l.b16 %v195
    %v459 = vunpack.c.l.b16 %v196
    %v460 = vunpack.c.l.b16 %v197
    %v461 = vunpack.c.l.b16 %v198
    %v462 = vunpack.c.l.b16 %v199
    %v463 = vunpack.c.l.b16 %v200
    %v464 = vunpack.c.l.b16 %v201
    %v465 = vunpack.c.l.b16 %v202
    %v466 = vunpack.c.l.b16 %v203
    %v467 = vpack.c.b16 %v340, %v339
    %v468 = vpack.c.b16 %v342, %v341
    %v469 = vpack.c.b16 %v344, %v343
    %v470 = vpack.c.b16 %v346, %v345
    %v471 = vpack.c.b16 %v348, %v347
    %v472 = vpack.c.b16 %v350, %v349
    %v473 = vpack.c.b16 %v352, %v351
    %v474 = vpack.c.b16 %v354, %v353
    %v475 = vpack.c.b16 %v356, %v355
    %v476 = vpack.c.b16 %v358, %v357
    %v477 = vpack.c.b16 %v360, %v359
    %v478 = vpack.c.b16 %v362, %v361
    %v479 = vpack.c.b16 %v364, %v363
    %v480 = vpack.c.b16 %v366, %v365
    %v481 = vpack.c.b16 %v368, %v367
    %v482 = vpack.c.b16 %v370, %v369
    %v483 = vpack.c.b16 %v372, %v371
    %v484 = vpack.c.b16 %v374, %v373
    %v485 = vpack.c.b16 %v376, %v375
    %v486 = vpack.c.b16 %v378, %v377
    %v487 = vpack.c.b16 %v380, %v379
    %v488 = vpack.c.b16 %v382, %v381
    %v489 = vpack.c.b16 %v384, %v383
    %v490 = vpack.c.b16 %v386, %v385
    %v491 = vpack.c.b16 %v388, %v387
    %v492 = vpack.c.b16 %v390, %v389
    %v493 = vpack.c.b16 %v392, %v391
    %v494 = vpack.c.b16 %v394, %v393
    %v495 = vpack.c.b16 %v396, %v395
    %v496 = vpack.c.b16 %v398, %v397
    %v497 = vpack.c.b16 %v400, %v399
    %v498 = vpack.c.b16 %v402, %v401
    %v499 = vpack.c.b16 %v404, %v403
    %v500 = vpack.c.b16 %v406, %v405
    %v501 = vpack.c.b16 %v408, %v407
    %v502 = vpack.c.b16 %v410, %v409
    %v503 = vpack.c.b16 %v412, %v411
    %v504 = vpack.c.b16 %v414, %v413
    %v505 = vpack.c.b16 %v416, %v415
    %v506 = vpack.c.b16 %v418, %v417
    %v507 = vpack.c.b16 %v420, %v419
    %v508 = vpack.c.b16 %v422, %v421
    %v509 = vpack.c.b16 %v424, %v423
    %v510 = vpack.c.b16 %v426, %v425
    %v511 = vpack.c.b16 %v428, %v427
    %v512 = vpack.c.b16 %v430, %v429
    %v513 = vpack.c.b16 %v432, %v431
    %v514 = vpack.c.b16 %v434, %v433
    %v515 = vpack.c.b16 %v436, %v435
    %v516 = vpack.c.b16 %v438, %v437
    %v517 = vpack.c.b16 %v440, %v439
    %v518 = vpack.c.b16 %v442, %v441
    %v519 = vpack.c.b16 %v444, %v443
    %v520 = vpack.c.b16 %v446, %v445
    %v521 = vpack.c.b16 %v448, %v447
    %v522 = vpack.c.b16 %v450, %v449
    %v523 = vpack.c.b16 %v452, %v451
    %v524 = vpack.c.b16 %v454, %v453
    %v525 = vpack.c.b16 %v456, %v455
    %v526 = vpack.c.b16 %v458, %v457
    %v527 = vpack.c.b16 %v460, %v459
    %v528 = vpack.c.b16 %v462, %v461
    %v529 = vpack.c.b16 %v464, %v463
    %v530 = vpack.c.b16 %v466, %v465
    %595 = vmatprep.subr.bf16.mxu0 0
    %596 = vmatpush1.bf16.msra.mxu0 %v474
    %597 = vmatprep.subr.bf16.mxu0 0
    %598 = vmatpush1.bf16.msra.mxu0 %v473
    %599 = vmatprep.subr.bf16.mxu0 0
    %600 = vmatpush1.bf16.msra.mxu0 %v472
    %601 = vmatprep.subr.bf16.mxu0 0
    %602 = vmatpush1.bf16.msra.mxu0 %v471
    %603 = vmatprep.subr.bf16.mxu0 0
    %604 = vmatpush1.bf16.msra.mxu0 %v470
    %605 = vmatprep.subr.bf16.mxu0 0
    %606 = vmatpush1.bf16.msra.mxu0 %v469
    %607 = vmatprep.subr.bf16.mxu0 0
    %608 = vmatpush1.bf16.msra.mxu0 %v468
    %609 = vmatprep.subr.bf16.mxu0 0
    %610 = vmatpush1.bf16.msra.mxu0 %v467
    %611 = vmatprep.subr.bf16.mxu0 0
    %612 = vmatpush2.bf16.msra.mxu0 %v482
    %613 = vmatprep.subr.bf16.mxu0 0
    %614 = vmatpush2.bf16.msra.mxu0 %v481
    %615 = vmatprep.subr.bf16.mxu0 0
    %616 = vmatpush2.bf16.msra.mxu0 %v480
    %617 = vmatprep.subr.bf16.mxu0 0
    %618 = vmatpush2.bf16.msra.mxu0 %v479
    %619 = vmatprep.subr.bf16.mxu0 0
    %620 = vmatpush2.bf16.msra.mxu0 %v478
    %621 = vmatprep.subr.bf16.mxu0 0
    %622 = vmatpush2.bf16.msra.mxu0 %v477
    %623 = vmatprep.subr.bf16.mxu0 0
    %624 = vmatpush2.bf16.msra.mxu0 %v476
    %625 = vmatprep.subr.bf16.mxu0 0
    %626 = vmatpush2.bf16.msra.mxu0 %v475
    %627 = vmatprep.mubr.bf16.mxu0 %v69
    %628 = vmatmul.mubr.bf16.gmra.mxu0 %v68
    %v629 = vpop.f32.mrf.mxu0
    %v630 = vadd.f32 %v209, %v629
    %v631 = vpop.f32.mrf.mxu0
    %v632 = vpop.f32.mrf.mxu0
    %v633 = vpop.f32.mrf.mxu0
    %634 = vdwg.mxu0
    %635 = vmatprep.subr.bf16.mxu0 0
    %636 = vmatpush1.bf16.msra.mxu0 %v490
    %637 = vmatprep.subr.bf16.mxu0 0
    %638 = vmatpush1.bf16.msra.mxu0 %v489
    %639 = vmatprep.subr.bf16.mxu0 0
    %640 = vmatpush1.bf16.msra.mxu0 %v488
    %641 = vmatprep.subr.bf16.mxu0 0
    %642 = vmatpush1.bf16.msra.mxu0 %v487
    %643 = vmatprep.subr.bf16.mxu0 0
    %644 = vmatpush1.bf16.msra.mxu0 %v486
    %645 = vmatprep.subr.bf16.mxu0 0
    %646 = vmatpush1.bf16.msra.mxu0 %v485
    %647 = vmatprep.subr.bf16.mxu0 0
    %648 = vmatpush1.bf16.msra.mxu0 %v484
    %649 = vmatprep.subr.bf16.mxu0 0
    %650 = vmatpush1.bf16.msra.mxu0 %v483
    %651 = vmatprep.subr.bf16.mxu0 0
    %652 = vmatpush2.bf16.msra.mxu0 %v498
    %653 = vmatprep.subr.bf16.mxu0 0
    %654 = vmatpush2.bf16.msra.mxu0 %v497
    %655 = vmatprep.subr.bf16.mxu0 0
    %656 = vmatpush2.bf16.msra.mxu0 %v496
    %657 = vmatprep.subr.bf16.mxu0 0
    %658 = vmatpush2.bf16.msra.mxu0 %v495
    %659 = vmatprep.subr.bf16.mxu0 0
    %660 = vmatpush2.bf16.msra.mxu0 %v494
    %661 = vmatprep.subr.bf16.mxu0 0
    %662 = vmatpush2.bf16.msra.mxu0 %v493
    %663 = vmatprep.subr.bf16.mxu0 0
    %664 = vmatpush2.bf16.msra.mxu0 %v492
    %665 = vmatprep.subr.bf16.mxu0 0
    %666 = vmatpush2.bf16.msra.mxu0 %v491
    %667 = vmatprep.mubr.bf16.mxu0 %v71
    %668 = vmatmul.mubr.bf16.gmra.mxu0 %v70
    %v669 = vpop.f32.mrf.mxu0
    %v670 = vadd.f32 %v630, %v669
    %v671 = vpop.f32.mrf.mxu0
    %v672 = vpop.f32.mrf.mxu0
    %v673 = vpop.f32.mrf.mxu0
    %674 = vdwg.mxu0
    %675 = vmatprep.subr.bf16.mxu0 0
    %676 = vmatpush1.bf16.msra.mxu0 %v506
    %677 = vmatprep.subr.bf16.mxu0 0
    %678 = vmatpush1.bf16.msra.mxu0 %v505
    %679 = vmatprep.subr.bf16.mxu0 0
    %680 = vmatpush1.bf16.msra.mxu0 %v504
    %681 = vmatprep.subr.bf16.mxu0 0
    %682 = vmatpush1.bf16.msra.mxu0 %v503
    %683 = vmatprep.subr.bf16.mxu0 0
    %684 = vmatpush1.bf16.msra.mxu0 %v502
    %685 = vmatprep.subr.bf16.mxu0 0
    %686 = vmatpush1.bf16.msra.mxu0 %v501
    %687 = vmatprep.subr.bf16.mxu0 0
    %688 = vmatpush1.bf16.msra.mxu0 %v500
    %689 = vmatprep.subr.bf16.mxu0 0
    %690 = vmatpush1.bf16.msra.mxu0 %v499
    %691 = vmatprep.subr.bf16.mxu0 0
    %692 = vmatpush2.bf16.msra.mxu0 %v514
    %693 = vmatprep.subr.bf16.mxu0 0
    %694 = vmatpush2.bf16.msra.mxu0 %v513
    %695 = vmatprep.subr.bf16.mxu0 0
    %696 = vmatpush2.bf16.msra.mxu0 %v512
    %697 = vmatprep.subr.bf16.mxu0 0
    %698 = vmatpush2.bf16.msra.mxu0 %v511
    %699 = vmatprep.subr.bf16.mxu0 0
    %700 = vmatpush2.bf16.msra.mxu0 %v510
    %701 = vmatprep.subr.bf16.mxu0 0
    %702 = vmatpush2.bf16.msra.mxu0 %v509
    %703 = vmatprep.subr.bf16.mxu0 0
    %704 = vmatpush2.bf16.msra.mxu0 %v508
    %705 = vmatprep.subr.bf16.mxu0 0
    %706 = vmatpush2.bf16.msra.mxu0 %v507
    %707 = vmatprep.mubr.bf16.mxu0 %v73
    %708 = vmatmul.mubr.bf16.gmra.mxu0 %v72
    %v709 = vpop.f32.mrf.mxu0
    %v710 = vadd.f32 %v670, %v709
    %v711 = vpop.f32.mrf.mxu0
    %v712 = vpop.f32.mrf.mxu0
    %v713 = vpop.f32.mrf.mxu0
    %714 = vdwg.mxu0
    %715 = vmatprep.subr.bf16.mxu0 0
    %716 = vmatpush1.bf16.msra.mxu0 %v522
    %717 = vmatprep.subr.bf16.mxu0 0
    %718 = vmatpush1.bf16.msra.mxu0 %v521
    %719 = vmatprep.subr.bf16.mxu0 0
    %720 = vmatpush1.bf16.msra.mxu0 %v520
    %721 = vmatprep.subr.bf16.mxu0 0
    %722 = vmatpush1.bf16.msra.mxu0 %v519
    %723 = vmatprep.subr.bf16.mxu0 0
    %724 = vmatpush1.bf16.msra.mxu0 %v518
    %725 = vmatprep.subr.bf16.mxu0 0
    %726 = vmatpush1.bf16.msra.mxu0 %v517
    %727 = vmatprep.subr.bf16.mxu0 0
    %728 = vmatpush1.bf16.msra.mxu0 %v516
    %729 = vmatprep.subr.bf16.mxu0 0
    %730 = vmatpush1.bf16.msra.mxu0 %v515
    %731 = vmatprep.subr.bf16.mxu0 0
    %732 = vmatpush2.bf16.msra.mxu0 %v530
    %733 = vmatprep.subr.bf16.mxu0 0
    %734 = vmatpush2.bf16.msra.mxu0 %v529
    %735 = vmatprep.subr.bf16.mxu0 0
    %736 = vmatpush2.bf16.msra.mxu0 %v528
    %737 = vmatprep.subr.bf16.mxu0 0
    %738 = vmatpush2.bf16.msra.mxu0 %v527
    %739 = vmatprep.subr.bf16.mxu0 0
    %740 = vmatpush2.bf16.msra.mxu0 %v526
    %741 = vmatprep.subr.bf16.mxu0 0
    %742 = vmatpush2.bf16.msra.mxu0 %v525
    %743 = vmatprep.subr.bf16.mxu0 0
    %744 = vmatpush2.bf16.msra.mxu0 %v524
    %745 = vmatprep.subr.bf16.mxu0 0
    %746 = vmatpush2.bf16.msra.mxu0 %v523
    %747 = vmatprep.mubr.bf16.mxu0 %v75
    %748 = vmatmul.mubr.bf16.gmra.mxu0 %v74
    %v749 = vpop.f32.mrf.mxu0
    %v750 = vadd.f32 %v710, %v749
    %v751 = vpop.f32.mrf.mxu0
    %v752 = vpop.f32.mrf.mxu0
    %v753 = vpop.f32.mrf.mxu0
    %754 = vdwg.mxu0
    %v755 = vpack.c.bf16 %v750, %v750
    %v756 = vld [vmem:[%s3] sm:$0xf]
    %v757 = vld [vmem:[%s3 + $0x4] sm:$0xf]
    %v758 = vld [vmem:[%s3 + $0x8] sm:$0xf]
    %v759 = vld [vmem:[%s3 + $0xc] sm:$0xf]
    %v760 = vld [vmem:[%s3 + $0x10] sm:$0xf]
    %v761 = vld [vmem:[%s3 + $0x14] sm:$0xf]
    %v762 = vld [vmem:[%s3 + $0x18] sm:$0xf]
    %v763 = vld [vmem:[%s3 + $0x1c] sm:$0xf]
    %v764 = vld [vmem:[%s3 + $0x20] sm:$0xf]
    %v765 = vld [vmem:[%s3 + $0x24] sm:$0xf]
    %v766 = vld [vmem:[%s3 + $0x28] sm:$0xf]
    %v767 = vld [vmem:[%s3 + $0x2c] sm:$0xf]
    %v768 = vld [vmem:[%s3 + $0x30] sm:$0xf]
    %v769 = vld [vmem:[%s3 + $0x34] sm:$0xf]
    %v770 = vld [vmem:[%s3 + $0x38] sm:$0xf]
    %v771 = vld [vmem:[%s3 + $0x3c] sm:$0xf]
    %v772 = vld [vmem:[%s4] sm:$0x1]
    %v774 = vlaneseq
    %v775 = vshrl.u32 %v774, 7
    %v776 = vsub.s32 0, %v775
    %v777 = vrot.slane %v772, %v776
    %v795 = vunpack.c.l.b16 %v756
    %v796 = vunpack.c.l.b16 %v757
    %v797 = vunpack.c.l.b16 %v758
    %v798 = vunpack.c.l.b16 %v759
    %v799 = vunpack.c.l.b16 %v760
    %v800 = vunpack.c.l.b16 %v761
    %v801 = vunpack.c.l.b16 %v762
    %v802 = vunpack.c.l.b16 %v763
    %v803 = vunpack.c.l.b16 %v764
    %v804 = vunpack.c.l.b16 %v765
    %v805 = vunpack.c.l.b16 %v766
    %v806 = vunpack.c.l.b16 %v767
    %v807 = vunpack.c.l.b16 %v768
    %v808 = vunpack.c.l.b16 %v769
    %v809 = vunpack.c.l.b16 %v770
    %v810 = vunpack.c.l.b16 %v771
    %v811 = vpack.c.b16 %v796, %v795
    %v812 = vpack.c.b16 %v798, %v797
    %v813 = vpack.c.b16 %v800, %v799
    %v814 = vpack.c.b16 %v802, %v801
    %v815 = vpack.c.b16 %v804, %v803
    %v816 = vpack.c.b16 %v806, %v805
    %v817 = vpack.c.b16 %v808, %v807
    %v818 = vpack.c.b16 %v810, %v809
    %827 = vmatprep.subr.bf16.mxu0 0
    %828 = vmatpush1.bf16.msra.mxu0 %v818
    %829 = vmatprep.subr.bf16.mxu0 0
    %830 = vmatpush1.bf16.msra.mxu0 %v817
    %831 = vmatprep.subr.bf16.mxu0 0
    %832 = vmatpush1.bf16.msra.mxu0 %v816
    %833 = vmatprep.subr.bf16.mxu0 0
    %834 = vmatpush1.bf16.msra.mxu0 %v815
    %835 = vmatprep.subr.bf16.mxu0 0
    %836 = vmatpush1.bf16.msra.mxu0 %v814
    %837 = vmatprep.subr.bf16.mxu0 0
    %838 = vmatpush1.bf16.msra.mxu0 %v813
    %839 = vmatprep.subr.bf16.mxu0 0
    %840 = vmatpush1.bf16.msra.mxu0 %v812
    %841 = vmatprep.subr.bf16.mxu0 0
    %842 = vmatpush1.bf16.msra.mxu0 %v811
    %843 = vmatprep.subr.bf16.mxu0 0
    %844 = vmatpush2.bf16.msra.mxu0 0
    %845 = vmatprep.subr.bf16.mxu0 0
    %846 = vmatpush2.bf16.msra.mxu0 0
    %847 = vmatprep.subr.bf16.mxu0 0
    %848 = vmatpush2.bf16.msra.mxu0 0
    %849 = vmatprep.subr.bf16.mxu0 0
    %850 = vmatpush2.bf16.msra.mxu0 0
    %851 = vmatprep.subr.bf16.mxu0 0
    %852 = vmatpush2.bf16.msra.mxu0 0
    %853 = vmatprep.subr.bf16.mxu0 0
    %854 = vmatpush2.bf16.msra.mxu0 0
    %855 = vmatprep.subr.bf16.mxu0 0
    %856 = vmatpush2.bf16.msra.mxu0 0
    %857 = vmatprep.subr.bf16.mxu0 0
    %858 = vmatpush2.bf16.msra.mxu0 0
    %859 = vmatprep.mubr.bf16.mxu0 0
    %860 = vmatmul.mubr.bf16.gmra.mxu0 %v755
    %v861 = vpop.f32.mrf.mxu0
    %v862 = vadd.f32 %v777, %v861
    %v863 = vpop.f32.mrf.mxu0
    %v864 = vpop.f32.mrf.mxu0
    %v865 = vpop.f32.mrf.mxu0
    %866 = vdwg.mxu0
    %v867 = vmax.f32 %v862, 0.0
    %v868 = vpack.c.bf16 %v867, %v867
    %v869 = vld [vmem:[%s5] sm:$0xf]
    %v870 = vld [vmem:[%s5 + $0x4] sm:$0xf]
    %v871 = vld [vmem:[%s6] sm:$0x1]
    %v873 = vlaneseq
    %v874 = vshrl.u32 %v873, 7
    %v875 = vsub.s32 0, %v874
    %v876 = vrot.slane %v871, %v875
    %v880 = vunpack.c.l.b16 %v869
    %v881 = vunpack.c.l.b16 %v870
    %v882 = vpack.c.b16 %v881, %v880
    %vm884 = vcmask 130048
    %v886 = vsel %vm884, %v868, 0
    %888 = vmatprep.subr.bf16.mxu0 0
    %889 = vmatpush1.bf16.msra.mxu0 0
    %890 = vmatprep.subr.bf16.mxu0 0
    %891 = vmatpush1.bf16.msra.mxu0 0
    %892 = vmatprep.subr.bf16.mxu0 0
    %893 = vmatpush1.bf16.msra.mxu0 0
    %894 = vmatprep.subr.bf16.mxu0 0
    %895 = vmatpush1.bf16.msra.mxu0 0
    %896 = vmatprep.subr.bf16.mxu0 0
    %897 = vmatpush1.bf16.msra.mxu0 0
    %898 = vmatprep.subr.bf16.mxu0 0
    %899 = vmatpush1.bf16.msra.mxu0 0
    %900 = vmatprep.subr.bf16.mxu0 0
    %901 = vmatpush1.bf16.msra.mxu0 0
    %902 = vmatprep.subr.bf16.mxu0 0
    %903 = vmatpush1.bf16.msra.mxu0 %v882
    %904 = vmatprep.subr.bf16.mxu0 0
    %905 = vmatpush2.bf16.msra.mxu0 0
    %906 = vmatprep.subr.bf16.mxu0 0
    %907 = vmatpush2.bf16.msra.mxu0 0
    %908 = vmatprep.subr.bf16.mxu0 0
    %909 = vmatpush2.bf16.msra.mxu0 0
    %910 = vmatprep.subr.bf16.mxu0 0
    %911 = vmatpush2.bf16.msra.mxu0 0
    %912 = vmatprep.subr.bf16.mxu0 0
    %913 = vmatpush2.bf16.msra.mxu0 0
    %914 = vmatprep.subr.bf16.mxu0 0
    %915 = vmatpush2.bf16.msra.mxu0 0
    %916 = vmatprep.subr.bf16.mxu0 0
    %917 = vmatpush2.bf16.msra.mxu0 0
    %918 = vmatprep.subr.bf16.mxu0 0
    %919 = vmatpush2.bf16.msra.mxu0 0
    %920 = vmatprep.mubr.bf16.mxu0 0
    %921 = vmatmul.mubr.bf16.gmra.mxu0 %v886
    %v922 = vpop.f32.mrf.mxu0
    %v923 = vadd.f32 %v876, %v922
    %v924 = vpop.f32.mrf.mxu0
    %v925 = vpop.f32.mrf.mxu0
    %v926 = vpop.f32.mrf.mxu0
    %927 = vdwg.mxu0
    %v928 = vadd.f32 %v750, %v923
    %v929 = vld [vmem:[%s7] sm:$0xf]
    %v930 = vld [vmem:[%s7 + $0x4] sm:$0xf]
    %v931 = vunpack.c.l.bf16 %v929
    %v932 = vunpack.c.l.bf16 %v930
    %v933 = vld [vmem:[%s8] sm:$0xf]
    %v934 = vld [vmem:[%s8 + $0x4] sm:$0xf]
    %v935 = vld [vmem:[%s8 + $0x8] sm:$0xf]
    %v936 = vld [vmem:[%s8 + $0xc] sm:$0xf]
    %v937 = vld [vmem:[%s8 + $0x10] sm:$0xf]
    %v938 = vld [vmem:[%s8 + $0x14] sm:$0xf]
    %v939 = vld [vmem:[%s8 + $0x18] sm:$0xf]
    %v940 = vld [vmem:[%s8 + $0x1c] sm:$0xf]
    %v941 = vld [vmem:[%s8 + $0x20] sm:$0xf]
    %v942 = vld [vmem:[%s8 + $0x24] sm:$0xf]
    %v943 = vld [vmem:[%s8 + $0x28] sm:$0xf]
    %v944 = vld [vmem:[%s8 + $0x2c] sm:$0xf]
    %v945 = vld [vmem:[%s8 + $0x30] sm:$0xf]
    %v946 = vld [vmem:[%s8 + $0x34] sm:$0xf]
    %v947 = vld [vmem:[%s8 + $0x38] sm:$0xf]
    %v948 = vld [vmem:[%s8 + $0x3c] sm:$0xf]
    %v949 = vld [vmem:[%s9] sm:$0x1]
    %v951 = vlaneseq
    %v952 = vshrl.u32 %v951, 7
    %v953 = vsub.s32 0, %v952
    %v954 = vrot.slane %v949, %v953
    %v958 = vunpack.c.l.b16 %v929
    %v959 = vunpack.c.l.b16 %v930
    %v960 = vpack.c.b16 %v959, %v958
    %v978 = vunpack.c.l.b16 %v933
    %v979 = vunpack.c.l.b16 %v934
    %v980 = vunpack.c.l.b16 %v935
    %v981 = vunpack.c.l.b16 %v936
    %v982 = vunpack.c.l.b16 %v937
    %v983 = vunpack.c.l.b16 %v938
    %v984 = vunpack.c.l.b16 %v939
    %v985 = vunpack.c.l.b16 %v940
    %v986 = vunpack.c.l.b16 %v941
    %v987 = vunpack.c.l.b16 %v942
    %v988 = vunpack.c.l.b16 %v943
    %v989 = vunpack.c.l.b16 %v944
    %v990 = vunpack.c.l.b16 %v945
    %v991 = vunpack.c.l.b16 %v946
    %v992 = vunpack.c.l.b16 %v947
    %v993 = vunpack.c.l.b16 %v948
    %v994 = vpack.c.b16 %v979, %v978
    %v995 = vpack.c.b16 %v981, %v980
    %v996 = vpack.c.b16 %v983, %v982
    %v997 = vpack.c.b16 %v985, %v984
    %v998 = vpack.c.b16 %v987, %v986
    %v999 = vpack.c.b16 %v989, %v988
    %v1000 = vpack.c.b16 %v991, %v990
    %v1001 = vpack.c.b16 %v993, %v992
    %1010 = vmatprep.subr.bf16.mxu0 0
    %1011 = vmatpush1.bf16.msra.mxu0 %v1001
    %1012 = vmatprep.subr.bf16.mxu0 0
    %1013 = vmatpush1.bf16.msra.mxu0 %v1000
    %1014 = vmatprep.subr.bf16.mxu0 0
    %1015 = vmatpush1.bf16.msra.mxu0 %v999
    %1016 = vmatprep.subr.bf16.mxu0 0
    %1017 = vmatpush1.bf16.msra.mxu0 %v998
    %1018 = vmatprep.subr.bf16.mxu0 0
    %1019 = vmatpush1.bf16.msra.mxu0 %v997
    %1020 = vmatprep.subr.bf16.mxu0 0
    %1021 = vmatpush1.bf16.msra.mxu0 %v996
    %1022 = vmatprep.subr.bf16.mxu0 0
    %1023 = vmatpush1.bf16.msra.mxu0 %v995
    %1024 = vmatprep.subr.bf16.mxu0 0
    %1025 = vmatpush1.bf16.msra.mxu0 %v994
    %1026 = vmatprep.subr.bf16.mxu0 0
    %1027 = vmatpush2.bf16.msra.mxu0 0
    %1028 = vmatprep.subr.bf16.mxu0 0
    %1029 = vmatpush2.bf16.msra.mxu0 0
    %1030 = vmatprep.subr.bf16.mxu0 0
    %1031 = vmatpush2.bf16.msra.mxu0 0
    %1032 = vmatprep.subr.bf16.mxu0 0
    %1033 = vmatpush2.bf16.msra.mxu0 0
    %1034 = vmatprep.subr.bf16.mxu0 0
    %1035 = vmatpush2.bf16.msra.mxu0 0
    %1036 = vmatprep.subr.bf16.mxu0 0
    %1037 = vmatpush2.bf16.msra.mxu0 0
    %1038 = vmatprep.subr.bf16.mxu0 0
    %1039 = vmatpush2.bf16.msra.mxu0 0
    %1040 = vmatprep.subr.bf16.mxu0 0
    %1041 = vmatpush2.bf16.msra.mxu0 0
    %1042 = vmatprep.mubr.bf16.mxu0 0
    %1043 = vmatmul.mubr.bf16.gmra.mxu0 %v960
    %v1044 = vpop.f32.mrf.mxu0
    %v1045 = vadd.f32 %v954, %v1044
    %v1046 = vpop.f32.mrf.mxu0
    %v1047 = vpop.f32.mrf.mxu0
    %v1048 = vadd.f32 %v954, %v1047
    %v1049 = vpop.f32.mrf.mxu0
    %1050 = vdwg.mxu0
    %v1051 = vmax.f32 %v1045, 0.0
    %v1052 = vmax.f32 %v1048, 0.0
    %v1053 = vpack.c.bf16 %v1052, %v1051
    %v1054 = vld [vmem:[%s10] sm:$0xf]
    %v1055 = vld [vmem:[%s10 + $0x4] sm:$0xf]
    %v1056 = vld [vmem:[%s11] sm:$0x1]
    %v1058 = vlaneseq
    %v1059 = vshrl.u32 %v1058, 7
    %v1060 = vsub.s32 0, %v1059
    %v1061 = vrot.slane %v1056, %v1060
    %v1065 = vunpack.c.l.b16 %v1054
    %v1066 = vunpack.c.l.b16 %v1055
    %v1067 = vpack.c.b16 %v1066, %v1065
    %v1070 = vsel %vm884, %v1053, 0
    %1072 = vmatprep.subr.bf16.mxu0 0
    %1073 = vmatpush1.bf16.msra.mxu0 0
    %1074 = vmatprep.subr.bf16.mxu0 0
    %1075 = vmatpush1.bf16.msra.mxu0 0
    %1076 = vmatprep.subr.bf16.mxu0 0
    %1077 = vmatpush1.bf16.msra.mxu0 0
    %1078 = vmatprep.subr.bf16.mxu0 0
    %1079 = vmatpush1.bf16.msra.mxu0 0
    %1080 = vmatprep.subr.bf16.mxu0 0
    %1081 = vmatpush1.bf16.msra.mxu0 0
    %1082 = vmatprep.subr.bf16.mxu0 0
    %1083 = vmatpush1.bf16.msra.mxu0 0
    %1084 = vmatprep.subr.bf16.mxu0 0
    %1085 = vmatpush1.bf16.msra.mxu0 0
    %1086 = vmatprep.subr.bf16.mxu0 0
    %1087 = vmatpush1.bf16.msra.mxu0 %v1067
    %1088 = vmatprep.subr.bf16.mxu0 0
    %1089 = vmatpush2.bf16.msra.mxu0 0
    %1090 = vmatprep.subr.bf16.mxu0 0
    %1091 = vmatpush2.bf16.msra.mxu0 0
    %1092 = vmatprep.subr.bf16.mxu0 0
    %1093 = vmatpush2.bf16.msra.mxu0 0
    %1094 = vmatprep.subr.bf16.mxu0 0
    %1095 = vmatpush2.bf16.msra.mxu0 0
    %1096 = vmatprep.subr.bf16.mxu0 0
    %1097 = vmatpush2.bf16.msra.mxu0 0
    %1098 = vmatprep.subr.bf16.mxu0 0
    %1099 = vmatpush2.bf16.msra.mxu0 0
    %1100 = vmatprep.subr.bf16.mxu0 0
    %1101 = vmatpush2.bf16.msra.mxu0 0
    %1102 = vmatprep.subr.bf16.mxu0 0
    %1103 = vmatpush2.bf16.msra.mxu0 0
    %1104 = vmatprep.mubr.bf16.mxu0 0
    %1105 = vmatmul.mubr.bf16.gmra.mxu0 %v1070
    %v1106 = vpop.f32.mrf.mxu0
    %v1107 = vadd.f32 %v1061, %v1106
    %v1108 = vpop.f32.mrf.mxu0
    %v1109 = vpop.f32.mrf.mxu0
    %v1110 = vadd.f32 %v1061, %v1109
    %v1111 = vpop.f32.mrf.mxu0
    %1112 = vdwg.mxu0
    %v1113 = vadd.f32 %v931, %v1107
    %v1114 = vadd.f32 %v932, %v1110
    %v1115 = vmul.f32 %v928, %v928
    %1116 = vadd.xlane.f32.xlu0 %v1115
    %v1117 = vpop.xlane.xlu0 %1116
    %v1118 = vmax.f32 %v1117, 1e-24
    %v1119 = vrsqrt.pop %v1118
    %v1120 = vmul.f32 %v928, %v1119
    %v1121 = vmul.f32 %v1113, %v1113
    %v1122 = vmul.f32 %v1114, %v1114
    %1123 = vadd.xlane.f32.xlu0 %v1121
    %v1124 = vpop.xlane.xlu0 %1123
    %1125 = vadd.xlane.f32.xlu0 %v1122
    %v1126 = vpop.xlane.xlu0 %1125
    %v1127 = vmax.f32 %v1124, 1e-24
    %v1128 = vmax.f32 %v1126, 1e-24
    %v1129 = vrsqrt.pop %v1127
    %v1130 = vrsqrt.pop %v1128
    %v1131 = vmul.f32 %v1113, %v1129
    %v1132 = vmul.f32 %v1114, %v1130
    %1133 = vmatprep.subr.mxu0 0.0
    %1134 = vmatpush1.xpose.msra.mxu0 0.0
    %1135 = vmatprep.subr.mxu0 0.0
    %1136 = vmatpush1.xpose.msra.mxu0 0.0
    %1137 = vmatprep.subr.mxu0 0.0
    %1138 = vmatpush1.xpose.msra.mxu0 0.0
    %1139 = vmatprep.subr.mxu0 0.0
    %1140 = vmatpush1.xpose.msra.mxu0 0.0
    %1141 = vmatprep.subr.mxu0 0.0
    %1142 = vmatpush1.xpose.msra.mxu0 0.0
    %1143 = vmatprep.subr.mxu0 0.0
    %1144 = vmatpush1.xpose.msra.mxu0 0.0
    %1145 = vmatprep.subr.mxu0 0.0
    %1146 = vmatpush1.xpose.msra.mxu0 0.0
    %1147 = vmatprep.subr.mxu0 0.0
    %1148 = vmatpush1.xpose.msra.mxu0 0.0
    %1149 = vmatprep.subr.mxu0 0.0
    %1150 = vmatpush1.xpose.msra.mxu0 0.0
    %1151 = vmatprep.subr.mxu0 0.0
    %1152 = vmatpush1.xpose.msra.mxu0 0.0
    %1153 = vmatprep.subr.mxu0 0.0
    %1154 = vmatpush1.xpose.msra.mxu0 0.0
    %1155 = vmatprep.subr.mxu0 0.0
    %1156 = vmatpush1.xpose.msra.mxu0 0.0
    %1157 = vmatprep.subr.mxu0 0.0
    %1158 = vmatpush1.xpose.msra.mxu0 0.0
    %1159 = vmatprep.subr.mxu0 0.0
    %1160 = vmatpush1.xpose.msra.mxu0 0.0
    %1161 = vmatprep.subr.mxu0 0.0
    %1162 = vmatpush1.xpose.msra.mxu0 %v1132
    %1163 = vmatprep.subr.mxu0 0.0
    %1164 = vmatpush1.xpose.msra.mxu0 %v1131
    %1165 = vmatprep.subr.mxu0 0.0
    %1166 = vmatpush2.xpose.msra.mxu0 0.0
    %1167 = vmatprep.subr.mxu0 0.0
    %1168 = vmatpush2.xpose.msra.mxu0 0.0
    %1169 = vmatprep.subr.mxu0 0.0
    %1170 = vmatpush2.xpose.msra.mxu0 0.0
    %1171 = vmatprep.subr.mxu0 0.0
    %1172 = vmatpush2.xpose.msra.mxu0 0.0
    %1173 = vmatprep.subr.mxu0 0.0
    %1174 = vmatpush2.xpose.msra.mxu0 0.0
    %1175 = vmatprep.subr.mxu0 0.0
    %1176 = vmatpush2.xpose.msra.mxu0 0.0
    %1177 = vmatprep.subr.mxu0 0.0
    %1178 = vmatpush2.xpose.msra.mxu0 0.0
    %1179 = vmatprep.subr.mxu0 0.0
    %1180 = vmatpush2.xpose.msra.mxu0 0.0
    %1181 = vmatprep.subr.mxu0 0.0
    %1182 = vmatpush2.xpose.msra.mxu0 0.0
    %1183 = vmatprep.subr.mxu0 0.0
    %1184 = vmatpush2.xpose.msra.mxu0 0.0
    %1185 = vmatprep.subr.mxu0 0.0
    %1186 = vmatpush2.xpose.msra.mxu0 0.0
    %1187 = vmatprep.subr.mxu0 0.0
    %1188 = vmatpush2.xpose.msra.mxu0 0.0
    %1189 = vmatprep.subr.mxu0 0.0
    %1190 = vmatpush2.xpose.msra.mxu0 0.0
    %1191 = vmatprep.subr.mxu0 0.0
    %1192 = vmatpush2.xpose.msra.mxu0 0.0
    %1193 = vmatprep.subr.mxu0 0.0
    %1194 = vmatpush2.xpose.msra.mxu0 0.0
    %1195 = vmatprep.subr.mxu0 0.0
    %1196 = vmatpush2.xpose.msra.mxu0 0.0
    %1197 = vmatprep.mubr.f32.mxu0 0.0
    %1198 = vmatmul.mubr.f32.gmra.mxu0 %v1120
    %v1199 = vpop.f32.mrf.mxu0
    %v1200 = vadd.f32 0.0, %v1199
    %v1201 = vpop.f32.mrf.mxu0
    %1202 = vdwg.mxu0
    %s1203 = sld [smem:[#allocation2]]
    %v1204 = vstv %s1203
    %v1205 = vmul.f32 %v1204, 1.442695
    %v1206 = vpow.pop %v1205
    %s1207 = vtos %v1206
    %v1208 = vstv %s1207
    %v1209 = vmul.f32 %v1200, %v1208
    %1210 = vst [vmem:[%s13] sm:$0xff] %v1209
    // Predicated region
    $region58: #{custom_clip_forward.1} parent=1 // pred_check
      _
    $region59: #{custom_clip_forward.1} parent=1 // pred_check_branch
      %1212 = sbr.rel (0) target = $region61
    $region60: #{custom_clip_forward.1} parent=1 // pred_region
      _
    $region61: #{custom_clip_forward.1} parent=1 // pred_fallthru
      _
    // Predicated region
    $region62: #{custom_clip_forward.1} parent=1 // pred_check
      _
    $region63: #{custom_clip_forward.1} parent=1 // pred_check_branch
      %1214 = sbr.rel (0) target = $region65
    $region64: #{custom_clip_forward.1} parent=1 // pred_region
      _
    $region65: #{custom_clip_forward.1} parent=1 // pred_fallthru
      _
    %1215 = vsyncpa [#allocation4], 1

</llo_original>
